<compile_context>
chip_gen: v5e
topology: v5e:2x2
jax: 0.10.0
libtpu: 0.0.40
codegen_flags: <defaults>
</compile_context>

<pallas_src>
import functools

import jax
import jax.numpy as jnp
from jax import lax
from jax.experimental import pallas as pl
from jax.experimental.pallas import tpu as pltpu

_LANE = 128                               # minimum lane-dense last dim
_TARGET_BLOCK_BYTES = 2 * 1024 * 1024     # ~2 MiB per operand block


def _sublane_multiple(dtype) -> int:
    itemsize = jnp.dtype(dtype).itemsize
    return {4: 8, 2: 16, 1: 32}.get(itemsize, 8)


def _round_up(x: int, m: int) -> int:
    return ((x + m - 1) // m) * m


def _uniform_crossover_kernel(seed_ref, x1_ref, x2_ref, o_ref, *, threshold):
    """child = where(hash(seed, global_index) < threshold, x1, x2) on one tile."""
    rows, lanes = x1_ref.shape
    pid = pl.program_id(0)

    # Global element index of every lane in this block.
    row_ids = lax.broadcasted_iota(jnp.int32, (rows, lanes), 0)
    lane_ids = lax.broadcasted_iota(jnp.int32, (rows, lanes), 1)
    idx = ((pid * rows + row_ids) * lanes + lane_ids).astype(jnp.uint32)
    seed = seed_ref[0].astype(jnp.uint32)

    # Counter-based PRNG: murmur3 fmix32 finalizer plus an extra seed round,
    # so (seed, idx) pairs never collide by simple addition.
    x = idx ^ (seed * jnp.uint32(0x9E3779B9))
    x = x ^ (x >> 16)
    x = x * jnp.uint32(0x85EBCA6B)
    x = x ^ (x >> 13)
    x = x * jnp.uint32(0xC2B2AE35)
    x = x ^ (x >> 16)
    x = (x + seed) * jnp.uint32(0x27D4EB2F)
    x = x ^ (x >> 15)

    take_x1 = x < jnp.uint32(threshold)          # P(take_x1) ~= p
    o_ref[...] = jnp.where(take_x1, x1_ref[...], x2_ref[...])


def uniform_crossover(x1: jax.Array, x2: jax.Array, *, p: float = 0.5,
                      seed: int = 0) -> jax.Array:
    """Pallas-backed uniform crossover: per-element pick from x1 w.p. p else x2."""
    assert x1.shape == x2.shape, "parent shapes must match"
    assert x1.dtype == x2.dtype, "parent dtypes must match"
    # Exact semantics for the degenerate probabilities.
    if p >= 1.0:
        return x1
    if p <= 0.0:
        return x2

    orig_shape = x1.shape
    total = x1.size
    dtype = x1.dtype
    itemsize = jnp.dtype(dtype).itemsize
    sub = _sublane_multiple(dtype)

    # Lane-dense layout: widest last dim (multiple of 128) the data supports,
    # so stores are full unmasked vst and DMAs are long.
    lanes = _LANE
    for cand in (1024, 512, 256):
        if total >= cand * sub:
            lanes = cand
            break

    rows_needed = -(-total // lanes)
    # Rows per block: ~2 MiB per operand (3 operands x 2 buffers = 12 MiB,
    # within default scoped VMEM on v5e/v6e/v7x), dtype-aware sublane multiple,
    # never bigger than the (padded) data itself.
    rows_blk = max(sub, (_TARGET_BLOCK_BYTES // (lanes * itemsize)) // sub * sub)
    rows_blk = min(rows_blk, _round_up(rows_needed, sub))
    rows_total = _round_up(rows_needed, rows_blk)
    padded = rows_total * lanes

    def to2d(x):
        xf = x.reshape(-1)
        if padded != total:  # only pay the pad copy for a ragged tail
            xf = jnp.pad(xf, (0, padded - total))
        return xf.reshape(rows_total, lanes)

    a2d, b2d = to2d(x1), to2d(x2)

    threshold = max(1, min(2 ** 32 - 1, int(round(p * (2 ** 32)))))
    seed32 = int(seed) & 0xFFFFFFFF
    if seed32 >= 2 ** 31:
        seed32 -= 2 ** 32
    seed_arr = jnp.asarray([seed32], dtype=jnp.int32)

    kernel = functools.partial(_uniform_crossover_kernel, threshold=threshold)
    out2d = pl.pallas_call(
        kernel,
        out_shape=jax.ShapeDtypeStruct((rows_total, lanes), dtype),
        grid=(rows_total // rows_blk,),
        in_specs=[
            pl.BlockSpec(memory_space=pltpu.MemorySpace.SMEM),        # seed scalar
            pl.BlockSpec((rows_blk, lanes), lambda i: (i, 0)),        # x1 tile
            pl.BlockSpec((rows_blk, lanes), lambda i: (i, 0)),        # x2 tile
        ],
        out_specs=pl.BlockSpec((rows_blk, lanes), lambda i: (i, 0)),
        compiler_params=pltpu.CompilerParams(
            dimension_semantics=("parallel",)),   # stateless PRNG -> megacore OK
    )(seed_arr, a2d, b2d)

    if padded == total:
        return out2d.reshape(orig_shape)
    return out2d.reshape(-1)[:total].reshape(orig_shape)


class CrossOver:
    """JAX/Pallas port of zenkai.tansaku.CrossOver (forward semantics only)."""

    # TODO(synk): `f` is an arbitrary user-supplied callable in the original
    # module; only Pallas-backed crossover functions (e.g. uniform_crossover)
    # are provided here.
    def __init__(self, f=None, **kwargs):
        self.f = f
        self.kwargs = kwargs

    def __call__(self, x1: jax.Array, x2: jax.Array) -> jax.Array:
        if self.f is not None:
            return self.f(x1, x2, **self.kwargs)
        return x1


if __name__ == "__main__":
    key = jax.random.PRNGKey(0)
    k1, k2 = jax.random.split(key)
    # Small NCHW-like parent tensors.
    x1 = jax.random.normal(k1, (2, 4, 16, 16), dtype=jnp.float32)
    x2 = jax.random.normal(k2, (2, 4, 16, 16), dtype=jnp.float32)

    # Default module (f=None): forward returns x1 exactly.
    identity_cross = CrossOver()
    out_id = jax.block_until_ready(identity_cross(x1, x2))
    assert out_id.shape == x1.shape and out_id.dtype == x1.dtype
    assert bool(jnp.all(out_id == x1))

    # Module with a Pallas-backed crossover function.
    cross = CrossOver(uniform_crossover, p=0.5, seed=42)
    child = jax.block_until_ready(cross(x1, x2))
    assert child.shape == x1.shape and child.dtype == x1.dtype

    # Every child element must come from exactly one of the two parents.
    from_x1 = child == x1
    from_x2 = child == x2
    assert bool(jnp.all(from_x1 | from_x2))
    # Sanity: with p=0.5 over 2048 elements, both parents should contribute.
    assert bool(jnp.any(from_x1)) and bool(jnp.any(from_x2))

    # Determinism: same seed -> same child.
    child2 = jax.block_until_ready(cross(x1, x2))
    assert bool(jnp.all(child == child2))

    print("KERNEL_OK")
</pallas_src>

<mosaic_0001>
module attributes {stable_mosaic.version = 11 : i64} {
  func.func @_uniform_crossover_kernel(%arg0: i32, %arg1: memref<1xi32, #tpu.memory_space<smem>>, %arg2: memref<8x256xf32, #tpu.memory_space<vmem>>, %arg3: memref<8x256xf32, #tpu.memory_space<vmem>>, %arg4: memref<8x256xf32, #tpu.memory_space<vmem>>) attributes {dimension_semantics = [#tpu.dimension_semantics<parallel>], iteration_bounds = array<i64: 1>, scalar_prefetch = 0 : i64, scratch_operands = 0 : i64, tpu.core_type = #tpu.core_type<tc>, window_params = [{transform_indices = @transform_0, window_bounds = array<i64: 1>}, {transform_indices = @transform_1, window_bounds = array<i64: 8, 256>}, {transform_indices = @transform_2, window_bounds = array<i64: 8, 256>}, {transform_indices = @transform_3, window_bounds = array<i64: 8, 256>}]} {
    %0 = tpu.iota {dimensions = array<i32: 0>} : vector<8x256xi32>
    %1 = tpu.iota {dimensions = array<i32: 1>} : vector<8x256xi32>
    %c8_i32 = arith.constant 8 : i32
    %2 = arith.muli %arg0, %c8_i32 : i32
    %3 = vector.broadcast %2 : i32 to vector<8x256xi32>
    %4 = arith.addi %3, %0 : vector<8x256xi32>
    %c256_i32 = arith.constant 256 : i32
    %5 = vector.broadcast %c256_i32 : i32 to vector<8x256xi32>
    %6 = arith.muli %4, %5 : vector<8x256xi32>
    %7 = arith.addi %6, %1 : vector<8x256xi32>
    %c0 = arith.constant 0 : index
    %8 = memref.load %arg1[%c0] : memref<1xi32, #tpu.memory_space<smem>>
    %c-1640531527_i32 = arith.constant -1640531527 : i32
    %9 = arith.muli %8, %c-1640531527_i32 : i32
    %10 = vector.broadcast %9 : i32 to vector<8x256xi32>
    %11 = arith.xori %7, %10 : vector<8x256xi32>
    %c16_i32 = arith.constant 16 : i32
    %12 = vector.broadcast %c16_i32 : i32 to vector<8x256xi32>
    %13 = arith.shrui %11, %12 : vector<8x256xi32>
    %14 = arith.xori %11, %13 : vector<8x256xi32>
    %c-2048144789_i32 = arith.constant -2048144789 : i32
    %15 = vector.broadcast %c-2048144789_i32 : i32 to vector<8x256xi32>
    %16 = arith.muli %14, %15 : vector<8x256xi32>
    %c13_i32 = arith.constant 13 : i32
    %17 = vector.broadcast %c13_i32 : i32 to vector<8x256xi32>
    %18 = arith.shrui %16, %17 : vector<8x256xi32>
    %19 = arith.xori %16, %18 : vector<8x256xi32>
    %c-1028477387_i32 = arith.constant -1028477387 : i32
    %20 = vector.broadcast %c-1028477387_i32 : i32 to vector<8x256xi32>
    %21 = arith.muli %19, %20 : vector<8x256xi32>
    %c16_i32_0 = arith.constant 16 : i32
    %22 = vector.broadcast %c16_i32_0 : i32 to vector<8x256xi32>
    %23 = arith.shrui %21, %22 : vector<8x256xi32>
    %24 = arith.xori %21, %23 : vector<8x256xi32>
    %25 = vector.broadcast %8 : i32 to vector<8x256xi32>
    %26 = arith.addi %24, %25 : vector<8x256xi32>
    %c668265263_i32 = arith.constant 668265263 : i32
    %27 = vector.broadcast %c668265263_i32 : i32 to vector<8x256xi32>
    %28 = arith.muli %26, %27 : vector<8x256xi32>
    %c15_i32 = arith.constant 15 : i32
    %29 = vector.broadcast %c15_i32 : i32 to vector<8x256xi32>
    %30 = arith.shrui %28, %29 : vector<8x256xi32>
    %31 = arith.xori %28, %30 : vector<8x256xi32>
    %c-2147483648_i32 = arith.constant -2147483648 : i32
    %32 = vector.broadcast %c-2147483648_i32 : i32 to vector<8x256xi32>
    %33 = arith.cmpi ult, %31, %32 : vector<8x256xi32>
    %c0_1 = arith.constant 0 : index
    %c0_2 = arith.constant 0 : index
    %34 = vector.load %arg2[%c0_1, %c0_2] : memref<8x256xf32, #tpu.memory_space<vmem>>, vector<8x256xf32>
    %c0_3 = arith.constant 0 : index
    %c0_4 = arith.constant 0 : index
    %35 = vector.load %arg3[%c0_3, %c0_4] : memref<8x256xf32, #tpu.memory_space<vmem>>, vector<8x256xf32>
    %36 = arith.select %33, %34, %35 : vector<8x256xi1>, vector<8x256xf32>
    %c0_5 = arith.constant 0 : index
    %c0_6 = arith.constant 0 : index
    %37 = vector.load %arg4[%c0_5, %c0_6] : memref<8x256xf32, #tpu.memory_space<vmem>>, vector<8x256xf32>
    tpu.vector_store %arg4[%c0_5, %c0_6], %36 {strides = array<i32>} : memref<8x256xf32, #tpu.memory_space<vmem>>, vector<8x256xf32>,
    return
  }
  func.func @transform_0(%arg0: i32) -> i32 {
    %c0_i32 = arith.constant 0 : i32
    %c0_i32_0 = arith.constant 0 : i32
    return %c0_i32 : i32
  }
  func.func @transform_1(%arg0: i32) -> (i32, i32) {
    %c0_i32 = arith.constant 0 : i32
    %c0_i32_0 = arith.constant 0 : i32
    return %arg0, %c0_i32 : i32, i32
  }
  func.func @transform_2(%arg0: i32) -> (i32, i32) {
    %c0_i32 = arith.constant 0 : i32
    %c0_i32_0 = arith.constant 0 : i32
    return %arg0, %c0_i32 : i32, i32
  }
  func.func @transform_3(%arg0: i32) -> (i32, i32) {
    %c0_i32 = arith.constant 0 : i32
    %c0_i32_0 = arith.constant 0 : i32
    return %arg0, %c0_i32 : i32, i32
  }
}

</mosaic_0001>

<llo_original>
// kernel: tpu_custom_call.1
$region0: #{tpu_custom_call.1}
  #allocation0 [shape = 'u32[]', space=smem, size = 0x4, offset = 0x4, fixed_abs, tag = 'smem constant byte address 0x4 - core index']
  #allocation1 [shape = 'u32[72,128]{1,0:T(1,128)}', space=vmem, size = 0x9000, scoped, tag = 'internal scratch']
  #allocation2 [shape = 's32[1]{0:T(128)S(6)}', space=smem, size = 0x200, scoped, tag = 'scoped memory for tpu_custom_call.1']
  %s0 = inlined_call_operand.<no memory space> [shape: s32[1], index: 0, kind: input, shape index: {}]
  %s1 = inlined_call_operand.hbm [shape: f32[8,256], index: 1, kind: input, shape index: {}]
  %s2 = inlined_call_operand.hbm [shape: f32[8,256], index: 2, kind: input, shape index: {}]
  %s3 = inlined_call_operand.hbm [shape: f32[8,256], index: 3, kind: output, shape index: {}]
  %s4 = sld [smem:[#allocation0]]
  $region30: #{tpu_custom_call.1} parent=0
    _
  %s6 = ssub.s32 1, %s4
  %s7 = scalar_select 0, %s6, %s4
  %8 = sst [smem:[#allocation2]] %s0
  $region1: #{tpu_custom_call.1} parent=0
    #allocation3 [shape = 'u8[8192]{0}', space=vmem, size = 0x2000, scoped, tag = 'input window, operand 1, single buffered']
    #allocation4 [shape = 's32[1]{0}', space=sflag, size = 0x4, scoped, tag = 'scoped memory for tpu_custom_call.1']
    #allocation5 [shape = 's32[1]{0}', space=sflag, size = 0x4, scoped, tag = 'scoped memory for tpu_custom_call.1']
    #allocation6 [shape = 'u8[8192]{0}', space=vmem, size = 0x2000, scoped, tag = 'input window, operand 2, single buffered']
    #allocation7 [shape = 's32[1]{0}', space=sflag, size = 0x4, scoped, tag = 'scoped memory for tpu_custom_call.1']
    #allocation8 [shape = 'u8[8192]{0}', space=vmem, size = 0x2000, scoped, tag = 'output window, operand 0, single buffered']
    %9 = vsyncpa [#allocation4], 0
    %10 = vsyncpa [#allocation7], 0
    %11 = vsyncpa [#allocation5], 0
    // Predicated region
    $region2: #{tpu_custom_call.1} parent=1 // pred_check
      _
    $region3: #{tpu_custom_call.1} parent=1 // pred_check_branch
      %13 = sbr.rel (0) target = $region5
    $region4: #{tpu_custom_call.1} parent=1 // pred_region
      _
    $region5: #{tpu_custom_call.1} parent=1 // pred_fallthru
      _
    // Predicated region
    $region6: #{tpu_custom_call.1} parent=1 // pred_check
      _
    $region7: #{tpu_custom_call.1} parent=1 // pred_check_branch
      %15 = sbr.rel (0) target = $region9
    $region8: #{tpu_custom_call.1} parent=1 // pred_region
      %17 = vsyncadd [#allocation4], 0
      %s19 = sshll.u32 %s1, 4
      %s20 = int_to_ptr.hbm [resolvable:$true] %s19
      %s21 = sshll.u32 [#allocation3], 4
      %s22 = int_to_ptr.vmem [resolvable:$true] %s21
      %24 = dma.hbm_to_vmem [thread:$0]  %s20, 256, %s22, [#allocation4]
    $region9: #{tpu_custom_call.1} parent=1 // pred_fallthru
      _
    // Predicated region
    $region10: #{tpu_custom_call.1} parent=1 // pred_check
      _
    $region11: #{tpu_custom_call.1} parent=1 // pred_check_branch
      %26 = sbr.rel (0) target = $region13
    $region12: #{tpu_custom_call.1} parent=1 // pred_region
      %28 = vsyncadd [#allocation7], 0
      %s30 = sshll.u32 %s2, 4
      %s31 = int_to_ptr.hbm [resolvable:$true] %s30
      %s32 = sshll.u32 [#allocation6], 4
      %s33 = int_to_ptr.vmem [resolvable:$true] %s32
      %35 = dma.hbm_to_vmem [thread:$0]  %s31, 256, %s33, [#allocation7]
    $region13: #{tpu_custom_call.1} parent=1 // pred_fallthru
      _
    // Predicated region
    $region14: #{tpu_custom_call.1} parent=1 // pred_check
      _
    $region15: #{tpu_custom_call.1} parent=1 // pred_check_branch
      %37 = sbr.rel (0) target = $region17
    $region16: #{tpu_custom_call.1} parent=1 // pred_region
      %39 = dma.done [#allocation4], 256
    $region17: #{tpu_custom_call.1} parent=1 // pred_fallthru
      _
    // Predicated region
    $region18: #{tpu_custom_call.1} parent=1 // pred_check
      _
    $region19: #{tpu_custom_call.1} parent=1 // pred_check_branch
      %41 = sbr.rel (0) target = $region21
    $region20: #{tpu_custom_call.1} parent=1 // pred_region
      %43 = dma.done [#allocation7], 256
    $region21: #{tpu_custom_call.1} parent=1 // pred_fallthru
      _
    %v44 = vlaneseq
    %v45 = vshrl.u32 %v44, 7
    %v46 = vlaneseq
    %v47 = vand.u32 %v46, 127
    %v48 = vadd.s32 %v47, 128
    %s49 = smul.u32 0, 8
    %v50 = vstv %s49
    %v51 = vadd.s32 %v50, %v45
    %v52 = vmul.u32 %v51, 256
    %v53 = vadd.s32 %v52, %v47
    %v54 = vadd.s32 %v52, %v48
    %s55 = sld [smem:[#allocation2]]
    %s56 = smul.u32 %s55, 2654435769
    %v57 = vstv %s56
    %v58 = vxor.u32 %v53, %v57
    %v59 = vxor.u32 %v54, %v57
    %v60 = vshrl.u32 %v58, 16
    %v61 = vshrl.u32 %v59, 16
    %v62 = vxor.u32 %v58, %v60
    %v63 = vxor.u32 %v59, %v61
    %v64 = vmul.u32 %v62, 2246822507
    %v65 = vmul.u32 %v63, 2246822507
    %v66 = vshrl.u32 %v64, 13
    %v67 = vshrl.u32 %v65, 13
    %v68 = vxor.u32 %v64, %v66
    %v69 = vxor.u32 %v65, %v67
    %v70 = vmul.u32 %v68, 3266489909
    %v71 = vmul.u32 %v69, 3266489909
    %v72 = vshrl.u32 %v70, 16
    %v73 = vshrl.u32 %v71, 16
    %v74 = vxor.u32 %v70, %v72
    %v75 = vxor.u32 %v71, %v73
    %v76 = vstv %s55
    %v77 = vadd.s32 %v74, %v76
    %v78 = vadd.s32 %v75, %v76
    %v79 = vmul.u32 %v77, 668265263
    %v80 = vmul.u32 %v78, 668265263
    %v81 = vshrl.u32 %v79, 15
    %v82 = vshrl.u32 %v80, 15
    %v83 = vxor.u32 %v79, %v81
    %v84 = vxor.u32 %v80, %v82
    %v85 = vadd.s32 %v83, 2147483648
    %vm87 = vcmp.lt.s32.totalorder %v85, 0
    %v88 = vadd.s32 %v84, 2147483648
    %vm90 = vcmp.lt.s32.totalorder %v88, 0
    %v91 = vld [vmem:[#allocation3] sm:$0xff]
    %v92 = vld [vmem:[#allocation3 + $0x8] sm:$0xff]
    %v93 = vld [vmem:[#allocation6] sm:$0xff]
    %v94 = vld [vmem:[#allocation6 + $0x8] sm:$0xff]
    %v95 = vsel %vm87, %v91, %v93
    %v96 = vsel %vm90, %v92, %v94
    %97 = vst [vmem:[#allocation8] sm:$0xff] %v95
    %98 = vst [vmem:[#allocation8 + $0x8] sm:$0xff] %v96
    // Predicated region
    $region22: #{tpu_custom_call.1} parent=1 // pred_check
      _
    $region23: #{tpu_custom_call.1} parent=1 // pred_check_branch
      %100 = sbr.rel (0) target = $region25
    $region24: #{tpu_custom_call.1} parent=1 // pred_region
      %102 = vsyncadd [#allocation5], 0
      %s104 = sshll.u32 [#allocation8], 4
      %s105 = int_to_ptr.vmem [resolvable:$true] %s104
      %s106 = sshll.u32 %s3, 4
      %s107 = int_to_ptr.hbm [resolvable:$true] %s106
      %109 = dma.vmem_to_hbm [thread:$0]  %s105, 256, %s107, [#allocation5]
    $region25: #{tpu_custom_call.1} parent=1 // pred_fallthru
      _
    // Predicated region
    $region26: #{tpu_custom_call.1} parent=1 // pred_check
      _
    $region27: #{tpu_custom_call.1} parent=1 // pred_check_branch
      %111 = sbr.rel (0) target = $region29
    $region28: #{tpu_custom_call.1} parent=1 // pred_region
      %113 = dma.done [#allocation5], 256
    $region29: #{tpu_custom_call.1} parent=1 // pred_fallthru
      _
    %114 = vsyncpa [#allocation4], 1
    %115 = vsyncpa [#allocation7], 1
    %116 = vsyncpa [#allocation5], 1

</llo_original>
